<compile_context>
chip_gen: v6e
topology: v6e:2x2x1
jax: 0.10.0
libtpu: 0.0.40
codegen_flags: <defaults>
</compile_context>

<pallas_src>
import functools

import jax
import jax.numpy as jnp
from jax.experimental import pallas as pl
from jax.experimental.pallas import tpu as pltpu


def _round_up(n: int, m: int) -> int:
    return ((n + m - 1) // m) * m


def simple_nn_kernel(x_ref, w1_ref, b1_ref, w2_ref, b2_ref, o_ref):
    x = x_ref[...]
    w1 = w1_ref[...]
    if x.dtype != w1.dtype:                      # only when an MXU dtype was requested
        x = x.astype(w1.dtype)
    # fc1: [TB, D] @ [D, Hp] + [1, Hp], f32 accumulation on the MXU.
    h = jnp.dot(x, w1, preferred_element_type=jnp.float32)
    h = jnp.maximum(h + b1_ref[...], 0.0)        # ReLU on the VPU (f32)
    w2 = w2_ref[...]
    if h.dtype != w2.dtype:                      # explicit cast only on the bf16 path
        h = h.astype(w2.dtype)
    # fc2: [TB, Hp] @ [Hp, Cp] + [1, Cp]
    out = jnp.dot(h, w2, preferred_element_type=jnp.float32) + b2_ref[...]
    # Store only the real classes (narrow masked vst — far fewer HBM bytes than
    # writing the lane-padded Cp=128 slab and slicing afterwards).
    c = o_ref.shape[-1]
    o_ref[...] = out[:, :c].astype(o_ref.dtype)


def prepare_params(w1, b1, w2, b2, *, mxu_dtype=None):
    """One-time (model-init) padding of the parameters to MXU-friendly shapes.

    w1: [D, H]  b1: [H]  w2: [H, C]  b2: [C]  (weights transposed vs. PyTorch)
    Zero pad columns/rows are exact no-ops: relu(0 + 0) = 0 and zero W2 rows
    contribute nothing.  If mxu_dtype is given (e.g. jnp.bfloat16 on v6e/v7x),
    the weights are stored in that dtype; biases / accumulation stay f32.
    """
    D, H = w1.shape
    C = w2.shape[1]
    H_pad = _round_up(H, 128)
    C_pad = _round_up(C, 128)

    w1_p = jnp.pad(w1, ((0, 0), (0, H_pad - H)))
    b1_p = jnp.pad(b1.reshape(1, H), ((0, 0), (0, H_pad - H)))
    w2_p = jnp.pad(w2, ((0, H_pad - H), (0, C_pad - C)))
    b2_p = jnp.pad(b2.reshape(1, C), ((0, 0), (0, C_pad - C)))

    if mxu_dtype is not None:
        w1_p = w1_p.astype(mxu_dtype)
        w2_p = w2_p.astype(mxu_dtype)
    return w1_p, b1_p, w2_p, b2_p


@functools.partial(jax.jit, static_argnames=("num_classes", "block_b"))
def simple_nn_forward(x, w1_p, b1_p, w2_p, b2_p, num_classes, block_b=2048):
    """relu(x @ w1 + b1) @ w2 + b2, fused in one Pallas call.

    x: [B, D];  w1_p/b1_p/w2_p/b2_p: pre-padded params from prepare_params.
    """
    B, D = x.shape
    H_pad = w1_p.shape[1]
    C_pad = w2_p.shape[1]
    C = num_classes
    out_dtype = x.dtype

    # Batch only padded to a sublane multiple (8) — never to a multiple of TB.
    B_pad = _round_up(B, 8)
    TB = min(block_b, B_pad)
    if B_pad > 8:
        # >= 2 tiles so the "parallel" axis can shard across both TCs on v7x.
        TB = min(TB, max(8, _round_up(pl.cdiv(B_pad, 2), 8)))
    grid_b = pl.cdiv(B_pad, TB)   # ragged last tile allowed

    x_p = jnp.pad(x, ((0, B_pad - B), (0, 0))) if B_pad != B else x

    bytes_accessed = (
        x_p.size * x_p.dtype.itemsize
        + w1_p.size * w1_p.dtype.itemsize + b1_p.size * b1_p.dtype.itemsize
        + w2_p.size * w2_p.dtype.itemsize + b2_p.size * b2_p.dtype.itemsize
        + B_pad * C * jnp.dtype(out_dtype).itemsize)
    cost = pl.CostEstimate(
        flops=2 * B_pad * (D * H_pad + H_pad * C_pad),
        transcendentals=0,
        bytes_accessed=bytes_accessed)

    out = pl.pallas_call(
        simple_nn_kernel,
        out_shape=jax.ShapeDtypeStruct((B_pad, C), out_dtype),
        grid=(grid_b,),
        in_specs=[
            # x: tiled over the batch grid axis (double-buffered by Pallas).
            pl.BlockSpec((TB, D), lambda i: (i, 0)),
            # Weights / biases: same block every iteration -> stay VMEM-resident.
            pl.BlockSpec((D, H_pad), lambda i: (0, 0)),
            pl.BlockSpec((1, H_pad), lambda i: (0, 0)),
            pl.BlockSpec((H_pad, C_pad), lambda i: (0, 0)),
            pl.BlockSpec((1, C_pad), lambda i: (0, 0)),
        ],
        out_specs=pl.BlockSpec((TB, C), lambda i: (i, 0)),
        compiler_params=pltpu.CompilerParams(
            dimension_semantics=("parallel",),
        ),
        cost_estimate=cost,
    )(x_p, w1_p, b1_p, w2_p, b2_p)

    return out if B_pad == B else out[:B]


def reference_forward(x, w1, b1, w2, b2):
    h = jnp.maximum(x @ w1 + b1, 0.0)
    return h @ w2 + b2


if __name__ == "__main__":
    # Small shapes consistent with SimpleNN: input_size -> 50 hidden -> num_classes.
    batch = 8
    input_size = 32
    hidden = 50
    num_classes = 4

    key = jax.random.PRNGKey(0)
    kx, kw1, kb1, kw2, kb2 = jax.random.split(key, 5)

    x = jax.random.normal(kx, (batch, input_size), dtype=jnp.float32)

    # Deterministic parameter init (uniform, roughly PyTorch Linear's scale).
    lim1 = 1.0 / (input_size ** 0.5)
    lim2 = 1.0 / (hidden ** 0.5)
    w1 = jax.random.uniform(kw1, (input_size, hidden), jnp.float32, -lim1, lim1)
    b1 = jax.random.uniform(kb1, (hidden,), jnp.float32, -lim1, lim1)
    w2 = jax.random.uniform(kw2, (hidden, num_classes), jnp.float32, -lim2, lim2)
    b2 = jax.random.uniform(kb2, (num_classes,), jnp.float32, -lim2, lim2)

    # One-time padding of the parameters (model-init / conversion time).
    w1_p, b1_p, w2_p, b2_p = prepare_params(w1, b1, w2, b2)

    out = simple_nn_forward(x, w1_p, b1_p, w2_p, b2_p, num_classes)
    out = jax.block_until_ready(out)
    ref = reference_forward(x, w1, b1, w2, b2)
    assert out.shape == (batch, num_classes)
    assert jnp.allclose(out, ref, atol=1e-5, rtol=1e-5)

    # Ragged-batch check: batch not a multiple of 8 nor of the tile size.
    x2 = jax.random.normal(kx, (37, input_size), dtype=jnp.float32)
    out2 = jax.block_until_ready(
        simple_nn_forward(x2, w1_p, b1_p, w2_p, b2_p, num_classes))
    ref2 = reference_forward(x2, w1, b1, w2, b2)
    assert out2.shape == (37, num_classes)
    assert jnp.allclose(out2, ref2, atol=1e-5, rtol=1e-5)

    print("KERNEL_OK")
</pallas_src>

<mosaic_0001>
module attributes {stable_mosaic.version = 11 : i64} {
  func.func @simple_nn_kernel(%arg0: i32, %arg1: memref<8x32xf32, #tpu.memory_space<vmem>>, %arg2: memref<32x128xf32, #tpu.memory_space<vmem>>, %arg3: memref<1x128xf32, #tpu.memory_space<vmem>>, %arg4: memref<128x128xf32, #tpu.memory_space<vmem>>, %arg5: memref<1x128xf32, #tpu.memory_space<vmem>>, %arg6: memref<8x4xf32, #tpu.memory_space<vmem>>) attributes {dimension_semantics = [#tpu.dimension_semantics<parallel>], iteration_bounds = array<i64: 1>, scalar_prefetch = 0 : i64, scratch_operands = 0 : i64, tpu.core_type = #tpu.core_type<tc>, window_params = [{transform_indices = @transform_0, window_bounds = array<i64: 8, 32>}, {pipeline_mode = #tpu.pipeline_mode<synchronous>, transform_indices = @transform_1, window_bounds = array<i64: 32, 128>}, {pipeline_mode = #tpu.pipeline_mode<synchronous>, transform_indices = @transform_2, window_bounds = array<i64: 1, 128>}, {pipeline_mode = #tpu.pipeline_mode<synchronous>, transform_indices = @transform_3, window_bounds = array<i64: 128, 128>}, {pipeline_mode = #tpu.pipeline_mode<synchronous>, transform_indices = @transform_4, window_bounds = array<i64: 1, 128>}, {transform_indices = @transform_5, window_bounds = array<i64: 8, 4>}]} {
    %c0 = arith.constant 0 : index
    %c0_0 = arith.constant 0 : index
    %0 = vector.load %arg1[%c0, %c0_0] : memref<8x32xf32, #tpu.memory_space<vmem>>, vector<8x32xf32>
    %c0_1 = arith.constant 0 : index
    %c0_2 = arith.constant 0 : index
    %1 = vector.load %arg2[%c0_1, %c0_2] : memref<32x128xf32, #tpu.memory_space<vmem>>, vector<32x128xf32>
    %cst = arith.constant dense<0.000000e+00> : vector<8x128xf32>
    %2 = tpu.matmul %0, %1, %cst {dimension_numbers = #tpu.dot_dimension_numbers<[1], [0], [0], [1], [0, 0, 1, 1], [], []>} : vector<8x32xf32>, vector<32x128xf32>, vector<8x128xf32> -> vector<8x128xf32>
    %c0_3 = arith.constant 0 : index
    %c0_4 = arith.constant 0 : index
    %3 = vector.load %arg3[%c0_3, %c0_4] : memref<1x128xf32, #tpu.memory_space<vmem>>, vector<1x128xf32>
    %4 = vector.broadcast %3 : vector<1x128xf32> to vector<8x128xf32>
    %5 = arith.addf %2, %4 : vector<8x128xf32>
    %cst_5 = arith.constant 0.000000e+00 : f32
    %6 = vector.broadcast %cst_5 : f32 to vector<8x128xf32>
    %7 = arith.maximumf %5, %6 : vector<8x128xf32>
    %c0_6 = arith.constant 0 : index
    %c0_7 = arith.constant 0 : index
    %8 = vector.load %arg4[%c0_6, %c0_7] : memref<128x128xf32, #tpu.memory_space<vmem>>, vector<128x128xf32>
    %cst_8 = arith.constant dense<0.000000e+00> : vector<8x128xf32>
    %9 = tpu.matmul %7, %8, %cst_8 {dimension_numbers = #tpu.dot_dimension_numbers<[1], [0], [0], [1], [0, 0, 1, 1], [], []>} : vector<8x128xf32>, vector<128x128xf32>, vector<8x128xf32> -> vector<8x128xf32>
    %c0_9 = arith.constant 0 : index
    %c0_10 = arith.constant 0 : index
    %10 = vector.load %arg5[%c0_9, %c0_10] : memref<1x128xf32, #tpu.memory_space<vmem>>, vector<1x128xf32>
    %11 = vector.broadcast %10 : vector<1x128xf32> to vector<8x128xf32>
    %12 = arith.addf %9, %11 : vector<8x128xf32>
    %13 = vector.extract_strided_slice %12 {offsets = [0, 0], sizes = [8, 4], strides = [1, 1]} : vector<8x128xf32> to vector<8x4xf32>
    %c0_11 = arith.constant 0 : index
    %c0_12 = arith.constant 0 : index
    %14 = vector.load %arg6[%c0_11, %c0_12] : memref<8x4xf32, #tpu.memory_space<vmem>>, vector<8x4xf32>
    tpu.vector_store %arg6[%c0_11, %c0_12], %13 {strides = array<i32>} : memref<8x4xf32, #tpu.memory_space<vmem>>, vector<8x4xf32>,
    return
  }
  func.func @transform_0(%arg0: i32) -> (i32, i32) {
    %c0_i32 = arith.constant 0 : i32
    %c0_i32_0 = arith.constant 0 : i32
    return %arg0, %c0_i32 : i32, i32
  }
  func.func @transform_1(%arg0: i32) -> (i32, i32) {
    %c0_i32 = arith.constant 0 : i32
    %c0_i32_0 = arith.constant 0 : i32
    %c0_i32_1 = arith.constant 0 : i32
    return %c0_i32, %c0_i32_0 : i32, i32
  }
  func.func @transform_2(%arg0: i32) -> (i32, i32) {
    %c0_i32 = arith.constant 0 : i32
    %c0_i32_0 = arith.constant 0 : i32
    %c0_i32_1 = arith.constant 0 : i32
    return %c0_i32, %c0_i32_0 : i32, i32
  }
  func.func @transform_3(%arg0: i32) -> (i32, i32) {
    %c0_i32 = arith.constant 0 : i32
    %c0_i32_0 = arith.constant 0 : i32
    %c0_i32_1 = arith.constant 0 : i32
    return %c0_i32, %c0_i32_0 : i32, i32
  }
  func.func @transform_4(%arg0: i32) -> (i32, i32) {
    %c0_i32 = arith.constant 0 : i32
    %c0_i32_0 = arith.constant 0 : i32
    %c0_i32_1 = arith.constant 0 : i32
    return %c0_i32, %c0_i32_0 : i32, i32
  }
  func.func @transform_5(%arg0: i32) -> (i32, i32) {
    %c0_i32 = arith.constant 0 : i32
    %c0_i32_0 = arith.constant 0 : i32
    return %arg0, %c0_i32 : i32, i32
  }
}

</mosaic_0001>

<llo_original>
// kernel: simple_nn_forward.1
$region0: #{simple_nn_forward.1}
  #allocation0 [shape = 'u32[]', space=smem, size = 0x4, offset = 0x4, fixed_abs, tag = 'smem constant byte address 0x4 - core index']
  #allocation1 [shape = 'u32[144,128]{1,0:T(1,128)}', space=vmem, size = 0x12000, scoped, tag = 'internal scratch']
  %s0 = inlined_call_operand.hbm [shape: f32[8,32], index: 0, kind: input, shape index: {}]
  %s1 = inlined_call_operand.hbm [shape: f32[32,128], index: 1, kind: input, shape index: {}]
  %s2 = inlined_call_operand.vmem [shape: f32[1,128], index: 2, kind: input, shape index: {}]
  %s3 = inlined_call_operand.hbm [shape: f32[128,128], index: 3, kind: input, shape index: {}]
  %s4 = inlined_call_operand.vmem [shape: f32[1,128], index: 4, kind: input, shape index: {}]
  %s5 = inlined_call_operand.vmem [shape: f32[8,4], index: 5, kind: output, shape index: {}]
  %s6 = sld [smem:[#allocation0]]
  $region42: #{simple_nn_forward.1} parent=0
    _
  %s8 = ssub.s32 1, %s6
  %s9 = scalar_select 0, %s8, %s6
  $region1: #{simple_nn_forward.1} parent=0
    #allocation2 [shape = 'u8[4096]{0}', space=vmem, size = 0x1000, scoped, tag = 'input window, operand 0, single buffered']
    #allocation3 [shape = 's32[1]{0}', space=sflag, size = 0x4, scoped, tag = 'scoped memory for simple_nn_forward.1']
    #allocation4 [shape = 'u8[16384]{0}', space=vmem, size = 0x4000, scoped, tag = 'input window, operand 1, single buffered']
    #allocation5 [shape = 's32[1]{0}', space=sflag, size = 0x4, scoped, tag = 'scoped memory for simple_nn_forward.1']
    #allocation6 [shape = 'u8[65536]{0}', space=vmem, size = 0x10000, scoped, tag = 'input window, operand 3, single buffered']
    %10 = vsyncpa [#allocation3], 0
    %11 = vsyncpa [#allocation5], 0
    // Predicated region
    $region2: #{simple_nn_forward.1} parent=1 // pred_check
      _
    $region3: #{simple_nn_forward.1} parent=1 // pred_check_branch
      %13 = sbr.rel (0) target = $region5
    $region4: #{simple_nn_forward.1} parent=1 // pred_region
      %s15 = ssub.s32 128, 128
      %16 = vsyncadd [#allocation3], %s15
      %s18 = sshll.u32 [#allocation2], 4
      %s19 = int_to_ptr.vmem [resolvable:$true] %s18
      %21 = dma.hbm_to_vmem [thread:$0]  %s0, 128, %s19, [#allocation3]
    $region5: #{simple_nn_forward.1} parent=1 // pred_fallthru
      _
    // Predicated region
    $region6: #{simple_nn_forward.1} parent=1 // pred_check
      _
    $region7: #{simple_nn_forward.1} parent=1 // pred_check_branch
      %23 = sbr.rel (0) target = $region9
    $region8: #{simple_nn_forward.1} parent=1 // pred_region
      %s25 = ssub.s32 512, 512
      %26 = vsyncadd [#allocation5], %s25
      %s27 = sshll.u32 [#allocation4], 4
      %s28 = int_to_ptr.vmem [resolvable:$true] %s27
      %33 = dma.hbm_to_vmem [thread:$0]  %s1, 512, %s28, [#allocation5], 128, 128, 8
    $region9: #{simple_nn_forward.1} parent=1 // pred_fallthru
      _
    // Predicated region
    $region10: #{simple_nn_forward.1} parent=1 // pred_check
      _
    $region11: #{simple_nn_forward.1} parent=1 // pred_check_branch
      %35 = sbr.rel (0) target = $region13
    $region12: #{simple_nn_forward.1} parent=1 // pred_region
      _
    $region13: #{simple_nn_forward.1} parent=1 // pred_fallthru
      _
    // Predicated region
    $region14: #{simple_nn_forward.1} parent=1 // pred_check
      _
    $region15: #{simple_nn_forward.1} parent=1 // pred_check_branch
      %37 = sbr.rel (0) target = $region17
    $region16: #{simple_nn_forward.1} parent=1 // pred_region
      %s39 = ssub.s32 2048, 2048
      %40 = vsyncadd [#allocation5], %s39
      %s41 = sshll.u32 [#allocation6], 4
      %s42 = int_to_ptr.vmem [resolvable:$true] %s41
      %47 = dma.hbm_to_vmem [thread:$0]  %s3, 2048, %s42, [#allocation5], 128, 128, 8
    $region17: #{simple_nn_forward.1} parent=1 // pred_fallthru
      _
    // Predicated region
    $region18: #{simple_nn_forward.1} parent=1 // pred_check
      _
    $region19: #{simple_nn_forward.1} parent=1 // pred_check_branch
      %49 = sbr.rel (0) target = $region21
    $region20: #{simple_nn_forward.1} parent=1 // pred_region
      _
    $region21: #{simple_nn_forward.1} parent=1 // pred_fallthru
      _
    // Predicated region
    $region22: #{simple_nn_forward.1} parent=1 // pred_check
      _
    $region23: #{simple_nn_forward.1} parent=1 // pred_check_branch
      %51 = sbr.rel (0) target = $region25
    $region24: #{simple_nn_forward.1} parent=1 // pred_region
      %52 = dma.done [#allocation3], 128
    $region25: #{simple_nn_forward.1} parent=1 // pred_fallthru
      _
    // Predicated region
    $region26: #{simple_nn_forward.1} parent=1 // pred_check
      _
    $region27: #{simple_nn_forward.1} parent=1 // pred_check_branch
      %54 = sbr.rel (0) target = $region29
    $region28: #{simple_nn_forward.1} parent=1 // pred_region
      %55 = dma.done [#allocation5], 512
    $region29: #{simple_nn_forward.1} parent=1 // pred_fallthru
      _
    // Predicated region
    $region30: #{simple_nn_forward.1} parent=1 // pred_check
      _
    $region31: #{simple_nn_forward.1} parent=1 // pred_check_branch
      %57 = sbr.rel (0) target = $region33
    $region32: #{simple_nn_forward.1} parent=1 // pred_region
      %58 = dma.done [#allocation5], 2048
    $region33: #{simple_nn_forward.1} parent=1 // pred_fallthru
      _
    %v59 = vld [vmem:[#allocation2] sm:$0xff]
    %v60 = vld [vmem:[#allocation4] sm:$0xff]
    %v61 = vld [vmem:[#allocation4 + $0x8] sm:$0xff]
    %v62 = vld [vmem:[#allocation4 + $0x10] sm:$0xff]
    %v63 = vld [vmem:[#allocation4 + $0x18] sm:$0xff]
    %v64 = vld [vmem:[%s2] sm:$0x1]
    %v66 = vlaneseq
    %v67 = vshrl.u32 %v66, 7
    %v68 = vsub.s32 0, %v67
    %v69 = vrot.slane %v64, %v68
    %vm71 = vcmask 261120
    %v73 = vsel %vm71, %v59, 0
    %75 = vmatprep.subr.mxu0 0.0
    %76 = vmatpush1.msra.mxu0 0.0
    %77 = vmatprep.subr.mxu0 0.0
    %78 = vmatpush1.msra.mxu0 0.0
    %79 = vmatprep.subr.mxu0 0.0
    %80 = vmatpush1.msra.mxu0 0.0
    %81 = vmatprep.subr.mxu0 0.0
    %82 = vmatpush1.msra.mxu0 0.0
    %83 = vmatprep.subr.mxu0 0.0
    %84 = vmatpush1.msra.mxu0 0.0
    %85 = vmatprep.subr.mxu0 0.0
    %86 = vmatpush1.msra.mxu0 0.0
    %87 = vmatprep.subr.mxu0 0.0
    %88 = vmatpush1.msra.mxu0 0.0
    %89 = vmatprep.subr.mxu0 0.0
    %90 = vmatpush1.msra.mxu0 0.0
    %91 = vmatprep.subr.mxu0 0.0
    %92 = vmatpush1.msra.mxu0 0.0
    %93 = vmatprep.subr.mxu0 0.0
    %94 = vmatpush1.msra.mxu0 0.0
    %95 = vmatprep.subr.mxu0 0.0
    %96 = vmatpush1.msra.mxu0 0.0
    %97 = vmatprep.subr.mxu0 0.0
    %98 = vmatpush1.msra.mxu0 0.0
    %99 = vmatprep.subr.mxu0 0.0
    %100 = vmatpush1.msra.mxu0 %v63
    %101 = vmatprep.subr.mxu0 0.0
    %102 = vmatpush1.msra.mxu0 %v62
    %103 = vmatprep.subr.mxu0 0.0
    %104 = vmatpush1.msra.mxu0 %v61
    %105 = vmatprep.subr.mxu0 0.0
    %106 = vmatpush1.msra.mxu0 %v60
    %107 = vmatprep.subr.mxu0 0.0
    %108 = vmatpush2.msra.mxu0 0.0
    %109 = vmatprep.subr.mxu0 0.0
    %110 = vmatpush2.msra.mxu0 0.0
    %111 = vmatprep.subr.mxu0 0.0
    %112 = vmatpush2.msra.mxu0 0.0
    %113 = vmatprep.subr.mxu0 0.0
    %114 = vmatpush2.msra.mxu0 0.0
    %115 = vmatprep.subr.mxu0 0.0
    %116 = vmatpush2.msra.mxu0 0.0
    %117 = vmatprep.subr.mxu0 0.0
    %118 = vmatpush2.msra.mxu0 0.0
    %119 = vmatprep.subr.mxu0 0.0
    %120 = vmatpush2.msra.mxu0 0.0
    %121 = vmatprep.subr.mxu0 0.0
    %122 = vmatpush2.msra.mxu0 0.0
    %123 = vmatprep.subr.mxu0 0.0
    %124 = vmatpush2.msra.mxu0 0.0
    %125 = vmatprep.subr.mxu0 0.0
    %126 = vmatpush2.msra.mxu0 0.0
    %127 = vmatprep.subr.mxu0 0.0
    %128 = vmatpush2.msra.mxu0 0.0
    %129 = vmatprep.subr.mxu0 0.0
    %130 = vmatpush2.msra.mxu0 0.0
    %131 = vmatprep.subr.mxu0 0.0
    %132 = vmatpush2.msra.mxu0 0.0
    %133 = vmatprep.subr.mxu0 0.0
    %134 = vmatpush2.msra.mxu0 0.0
    %135 = vmatprep.subr.mxu0 0.0
    %136 = vmatpush2.msra.mxu0 0.0
    %137 = vmatprep.subr.mxu0 0.0
    %138 = vmatpush2.msra.mxu0 0.0
    %139 = vmatprep.mubr.f32.mxu0 0.0
    %140 = vmatmul.mubr.f32.gmra.mxu0 %v73
    %v141 = vpop.f32.mrf.mxu0
    %v142 = vadd.f32 %v69, %v141
    %v143 = vpop.f32.mrf.mxu0
    %144 = vdwg.mxu0
    %v145 = vmax.f32 %v142, 0.0
    %v146 = vld [vmem:[#allocation6] sm:$0xff]
    %v147 = vld [vmem:[#allocation6 + $0x8] sm:$0xff]
    %v148 = vld [vmem:[#allocation6 + $0x10] sm:$0xff]
    %v149 = vld [vmem:[#allocation6 + $0x18] sm:$0xff]
    %v150 = vld [vmem:[#allocation6 + $0x20] sm:$0xff]
    %v151 = vld [vmem:[#allocation6 + $0x28] sm:$0xff]
    %v152 = vld [vmem:[#allocation6 + $0x30] sm:$0xff]
    %v153 = vld [vmem:[#allocation6 + $0x38] sm:$0xff]
    %v154 = vld [vmem:[#allocation6 + $0x40] sm:$0xff]
    %v155 = vld [vmem:[#allocation6 + $0x48] sm:$0xff]
    %v156 = vld [vmem:[#allocation6 + $0x50] sm:$0xff]
    %v157 = vld [vmem:[#allocation6 + $0x58] sm:$0xff]
    %v158 = vld [vmem:[#allocation6 + $0x60] sm:$0xff]
    %v159 = vld [vmem:[#allocation6 + $0x68] sm:$0xff]
    %v160 = vld [vmem:[#allocation6 + $0x70] sm:$0xff]
    %v161 = vld [vmem:[#allocation6 + $0x78] sm:$0xff]
    %v162 = vld [vmem:[%s4] sm:$0x1]
    %v164 = vlaneseq
    %v165 = vshrl.u32 %v164, 7
    %v166 = vsub.s32 0, %v165
    %v167 = vrot.slane %v162, %v166
    %169 = vmatprep.subr.mxu0 0.0
    %170 = vmatpush1.msra.mxu0 %v161
    %171 = vmatprep.subr.mxu0 0.0
    %172 = vmatpush1.msra.mxu0 %v160
    %173 = vmatprep.subr.mxu0 0.0
    %174 = vmatpush1.msra.mxu0 %v159
    %175 = vmatprep.subr.mxu0 0.0
    %176 = vmatpush1.msra.mxu0 %v158
    %177 = vmatprep.subr.mxu0 0.0
    %178 = vmatpush1.msra.mxu0 %v157
    %179 = vmatprep.subr.mxu0 0.0
    %180 = vmatpush1.msra.mxu0 %v156
    %181 = vmatprep.subr.mxu0 0.0
    %182 = vmatpush1.msra.mxu0 %v155
    %183 = vmatprep.subr.mxu0 0.0
    %184 = vmatpush1.msra.mxu0 %v154
    %185 = vmatprep.subr.mxu0 0.0
    %186 = vmatpush1.msra.mxu0 %v153
    %187 = vmatprep.subr.mxu0 0.0
    %188 = vmatpush1.msra.mxu0 %v152
    %189 = vmatprep.subr.mxu0 0.0
    %190 = vmatpush1.msra.mxu0 %v151
    %191 = vmatprep.subr.mxu0 0.0
    %192 = vmatpush1.msra.mxu0 %v150
    %193 = vmatprep.subr.mxu0 0.0
    %194 = vmatpush1.msra.mxu0 %v149
    %195 = vmatprep.subr.mxu0 0.0
    %196 = vmatpush1.msra.mxu0 %v148
    %197 = vmatprep.subr.mxu0 0.0
    %198 = vmatpush1.msra.mxu0 %v147
    %199 = vmatprep.subr.mxu0 0.0
    %200 = vmatpush1.msra.mxu0 %v146
    %201 = vmatprep.subr.mxu0 0.0
    %202 = vmatpush2.msra.mxu0 0.0
    %203 = vmatprep.subr.mxu0 0.0
    %204 = vmatpush2.msra.mxu0 0.0
    %205 = vmatprep.subr.mxu0 0.0
    %206 = vmatpush2.msra.mxu0 0.0
    %207 = vmatprep.subr.mxu0 0.0
    %208 = vmatpush2.msra.mxu0 0.0
    %209 = vmatprep.subr.mxu0 0.0
    %210 = vmatpush2.msra.mxu0 0.0
    %211 = vmatprep.subr.mxu0 0.0
    %212 = vmatpush2.msra.mxu0 0.0
    %213 = vmatprep.subr.mxu0 0.0
    %214 = vmatpush2.msra.mxu0 0.0
    %215 = vmatprep.subr.mxu0 0.0
    %216 = vmatpush2.msra.mxu0 0.0
    %217 = vmatprep.subr.mxu0 0.0
    %218 = vmatpush2.msra.mxu0 0.0
    %219 = vmatprep.subr.mxu0 0.0
    %220 = vmatpush2.msra.mxu0 0.0
    %221 = vmatprep.subr.mxu0 0.0
    %222 = vmatpush2.msra.mxu0 0.0
    %223 = vmatprep.subr.mxu0 0.0
    %224 = vmatpush2.msra.mxu0 0.0
    %225 = vmatprep.subr.mxu0 0.0
    %226 = vmatpush2.msra.mxu0 0.0
    %227 = vmatprep.subr.mxu0 0.0
    %228 = vmatpush2.msra.mxu0 0.0
    %229 = vmatprep.subr.mxu0 0.0
    %230 = vmatpush2.msra.mxu0 0.0
    %231 = vmatprep.subr.mxu0 0.0
    %232 = vmatpush2.msra.mxu0 0.0
    %233 = vmatprep.mubr.f32.mxu0 0.0
    %234 = vmatmul.mubr.f32.gmra.mxu0 %v145
    %v235 = vpop.f32.mrf.mxu0
    %v236 = vadd.f32 %v167, %v235
    %v237 = vpop.f32.mrf.mxu0
    %238 = vdwg.mxu0
    %vm239 = vcmask 31744
    %240 = vst.msk [vmem:[%s5] sm:$0xff] %vm239, %v236
    // Predicated region
    $region34: #{simple_nn_forward.1} parent=1 // pred_check
      _
    $region35: #{simple_nn_forward.1} parent=1 // pred_check_branch
      %242 = sbr.rel (0) target = $region37
    $region36: #{simple_nn_forward.1} parent=1 // pred_region
      _
    $region37: #{simple_nn_forward.1} parent=1 // pred_fallthru
      _
    // Predicated region
    $region38: #{simple_nn_forward.1} parent=1 // pred_check
      _
    $region39: #{simple_nn_forward.1} parent=1 // pred_check_branch
      %244 = sbr.rel (0) target = $region41
    $region40: #{simple_nn_forward.1} parent=1 // pred_region
      _
    $region41: #{simple_nn_forward.1} parent=1 // pred_fallthru
      _
    %245 = vsyncpa [#allocation3], 1
    %246 = vsyncpa [#allocation5], 1

</llo_original>
